<compile_context>
chip_gen: v5e
topology: v5e:2x2
jax: 0.10.0
libtpu: 0.0.40
codegen_flags: <defaults>
</compile_context>

<pallas_src>
import jax
import jax.numpy as jnp
import numpy as np
from jax import lax
from jax.experimental import pallas as pl
from jax.experimental.pallas import tpu as pltpu

LEAKY_SLOPE = 0.1


def _leaky(x):
    # max(x, a*x) == leaky_relu for 0 < a < 1: one VPU mul + one max.
    return jnp.maximum(x, LEAKY_SLOPE * x)


# ----------------------------------------------------------------------------
# Glue (plain JAX): timestep embedding, parameter init.
# ----------------------------------------------------------------------------
def timestep_embedding(t, embed_dim):
    half = embed_dim // 2
    freqs = jnp.exp(-jnp.log(10000.0)
                    * jnp.arange(half, dtype=jnp.float32) / (half - 1))
    args = t.astype(jnp.float32)[:, None] * freqs[None, :]
    return jnp.concatenate([jnp.sin(args), jnp.cos(args)], axis=1)  # (B, E)


def init_params(key, data_dim=3, embed_dim=64, hidden_dim=64, out_channels=3):
    ks = jax.random.split(key, 14)

    def lin(k, i, o):
        return jax.random.normal(k, (i, o), jnp.float32) / jnp.sqrt(i)

    def bias(k, o):
        return 0.01 * jax.random.normal(k, (1, o), jnp.float32)

    return dict(
        data_dim=data_dim, embed_dim=embed_dim,
        hidden_dim=hidden_dim, out_channels=out_channels,
        we1=lin(ks[0], embed_dim, embed_dim), be1=bias(ks[1], embed_dim),
        we2=lin(ks[2], embed_dim, embed_dim), be2=bias(ks[3], embed_dim),
        w1x=lin(ks[4], data_dim, hidden_dim),
        w1t=lin(ks[5], embed_dim, hidden_dim), b1=bias(ks[6], hidden_dim),
        w2a=lin(ks[7], hidden_dim, hidden_dim),
        w2b=lin(ks[8], hidden_dim, hidden_dim), b2=bias(ks[9], hidden_dim),
        w3=lin(ks[10], hidden_dim, out_channels), b3=bias(ks[11], out_channels),
    )


# ----------------------------------------------------------------------------
# Pallas wrapper.
# ----------------------------------------------------------------------------
def pvcnn_forward(params, x_bcn, t):
    """x_bcn: (B, C_in, N) PyTorch layout; t: (B,) timesteps -> (B, 3, N)."""
    B, Cin, N = x_bcn.shape
    E = params["embed_dim"]
    H = params["hidden_dim"]
    Co = params["out_channels"]
    Co_pad = ((Co + 7) // 8) * 8          # unmasked full-sublane output stores

    # Two "parallel" grid steps (keeps both v7x TCs busy); fold B//2 clouds
    # per step along the lane axis (widens MXU RHS to 256+ lanes when B >= 4).
    num_steps = 2 if (B >= 2 and B % 2 == 0) else 1
    B_TILE = B // num_steps
    L = B_TILE * N

    xf = x_bcn.astype(jnp.float32)

    # -- hoisted to XLA: sinusoidal embedding + embedf MLP + temb->hidden proj
    temb0 = timestep_embedding(t, E)                                  # (B, E)
    t1 = _leaky(temb0 @ params["we1"] + params["be1"])
    temb = t1 @ params["we2"] + params["be2"]                         # (B, E)
    t_proj = temb @ params["w1t"] + params["b1"]                      # (B, H)

    # -- lane-folded activations ---------------------------------------------
    x_cf = jnp.transpose(xf.reshape(num_steps, B_TILE, Cin, N),
                         (0, 2, 1, 3)).reshape(num_steps, Cin, L)     # (S,Cin,L)
    # lane-dense timestep-bias slab (b1 folded in): (S, H, L)
    t_bias = jnp.broadcast_to(
        jnp.transpose(t_proj.reshape(num_steps, B_TILE, H),
                      (0, 2, 1))[..., None],
        (num_steps, H, B_TILE, N)).reshape(num_steps, H, L)

    # -- packed channel-first weight slabs (constant index_map -> no re-DMA) --
    wp1 = jnp.concatenate([params["w1x"].T, params["b2"].T], axis=1)  # (H, Cin+1)
    wp2 = jnp.concatenate([params["w2a"].T, params["w2b"].T], axis=1) # (H, 2H)
    wp3 = jnp.pad(jnp.concatenate([params["w3"].T, params["b3"].T], axis=1),
                  ((0, Co_pad - Co), (0, 0)))                         # (Co_pad, H+1)

    use_sm = B_TILE > 1
    if use_sm:
        # cloud-membership matrix: sm[b, l] = 1 if lane l belongs to cloud b.
        sm = jnp.kron(jnp.eye(B_TILE, dtype=jnp.float32),
                      jnp.ones((1, N), jnp.float32))                  # (B_TILE, L)

    def kernel(*refs):
        if use_sm:
            x_ref, tb_ref, sm_ref, wp1_ref, wp2_ref, wp3_ref, o_ref = refs
        else:
            x_ref, tb_ref, wp1_ref, wp2_ref, wp3_ref, o_ref = refs

        x = x_ref[0]                                  # (Cin, L) channel-first

        # layer 1: K = Cin is tiny -> Cin VPU broadcast-FMAs; bias add is
        # lane-dense (pre-broadcast t-embedding slab).
        h1 = tb_ref[0] + wp1_ref[:, 0:1] * x[0:1, :]
        for c in range(1, Cin):
            h1 = h1 + wp1_ref[:, c:c + 1] * x[c:c + 1, :]
        h1 = _leaky(h1)                               # (H, L)
        b2 = wp1_ref[:, Cin:Cin + 1]                  # (H, 1)

        # pooled global-feature branch (voxel-branch stand-in), split matmul:
        # no (2H, L) intermediate, per-cloud mean stays per-cloud.
        if use_sm:
            smk = sm_ref[...]                                            # (B_TILE, L)
            g = lax.dot_general(h1, smk, (((1,), (1,)), ((), ())),
                                preferred_element_type=jnp.float32) * (1.0 / N)
            wg = jnp.dot(wp2_ref[:, H:], g,
                         preferred_element_type=jnp.float32)             # (H, B_TILE)
            pool = jnp.dot(wg, smk,
                           preferred_element_type=jnp.float32)           # (H, L)
        else:
            g = jnp.mean(h1, axis=1, keepdims=True)                      # (H, 1)
            pool = jnp.dot(wp2_ref[:, H:], g,
                           preferred_element_type=jnp.float32)           # (H, 1)

        h2 = _leaky(jnp.dot(wp2_ref[:, :H], h1,
                            preferred_element_type=jnp.float32)
                    + pool + b2)                      # (H, L)

        # output pointwise conv -> (Co_pad, L): unmasked lane-dense store.
        out = (jnp.dot(wp3_ref[:, :H], h2,
                       preferred_element_type=jnp.float32)
               + wp3_ref[:, H:])                      # (Co_pad, L)
        o_ref[0] = out.astype(o_ref.dtype)

    in_specs = [
        pl.BlockSpec((1, Cin, L), lambda g: (g, 0, 0)),   # x (channel-first, lane-folded)
        pl.BlockSpec((1, H, L), lambda g: (g, 0, 0)),     # t-embedding bias slab
    ]
    inputs = [x_cf, t_bias]
    if use_sm:
        in_specs.append(pl.BlockSpec((B_TILE, L), lambda g: (0, 0)))
        inputs.append(sm)
    in_specs += [
        pl.BlockSpec((H, Cin + 1), lambda g: (0, 0)),     # [w1x.T | b2]
        pl.BlockSpec((H, 2 * H), lambda g: (0, 0)),       # [w2a.T | w2b.T]
        pl.BlockSpec((Co_pad, H + 1), lambda g: (0, 0)),  # [w3.T  | b3] (padded)
    ]
    inputs += [wp1, wp2, wp3]

    out_spec = pl.BlockSpec((1, Co_pad, L), lambda g: (g, 0, 0))

    flops = 2 * num_steps * L * H * (Cin + H + Co_pad) + 4 * num_steps * H * H * B_TILE
    bytes_accessed = 4 * (num_steps * (Cin + H + Co_pad) * L
                          + H * (Cin + 1) + 2 * H * H + Co_pad * (H + 1))
    cost = pl.CostEstimate(flops=flops, transcendentals=0,
                           bytes_accessed=bytes_accessed)

    y_pad = pl.pallas_call(
        kernel,
        out_shape=jax.ShapeDtypeStruct((num_steps, Co_pad, L), jnp.float32),
        grid_spec=pltpu.PrefetchScalarGridSpec(
            num_scalar_prefetch=0,
            grid=(num_steps,),
            in_specs=in_specs,
            out_specs=out_spec,
        ),
        compiler_params=pltpu.CompilerParams(
            dimension_semantics=("parallel",)),
        cost_estimate=cost,
    )(*inputs)

    # un-fold lanes and drop the channel padding
    y = jnp.transpose(y_pad.reshape(num_steps, Co_pad, B_TILE, N),
                      (0, 2, 1, 3)).reshape(B, Co_pad, N)
    return y[:, :Co, :]                                   # (B, 3, N)


def pvcnn_forward_ref(params, x_bcn, t):
    """Pure-JAX reference with identical math (for validation)."""
    x = jnp.transpose(x_bcn, (0, 2, 1)).astype(jnp.float32)         # (B, N, Cin)
    temb0 = timestep_embedding(t, params["embed_dim"])[:, None, :]  # (B, 1, E)
    t1 = _leaky(temb0 @ params["we1"] + params["be1"])
    temb = t1 @ params["we2"] + params["be2"]                       # (B, 1, E)
    h1 = _leaky(x @ params["w1x"] + temb @ params["w1t"] + params["b1"])
    g = jnp.mean(h1, axis=1, keepdims=True)
    h2 = _leaky(h1 @ params["w2a"] + g @ params["w2b"] + params["b2"])
    out = h2 @ params["w3"] + params["b3"]
    return jnp.transpose(out, (0, 2, 1))                            # (B, 3, N)


if __name__ == "__main__":
    key = jax.random.PRNGKey(0)
    k_param, k_x = jax.random.split(key)

    B, DATA_DIM, N = 2, 3, 128           # small shapes: 2 clouds of 128 points
    params = init_params(k_param, data_dim=DATA_DIM,
                         embed_dim=64, hidden_dim=64, out_channels=3)

    x = jax.random.normal(k_x, (B, DATA_DIM, N), jnp.float32)    # PyTorch (B,C,N)
    t = jnp.array([10.0, 500.0], dtype=jnp.float32)              # timesteps (B,)

    y = pvcnn_forward(params, x, t)
    y = jax.block_until_ready(y)

    y_ref = pvcnn_forward_ref(params, x, t)
    assert y.shape == (B, 3, N), y.shape
    np.testing.assert_allclose(np.asarray(y), np.asarray(y_ref),
                               rtol=1e-4, atol=1e-4)
    print("KERNEL_OK")
</pallas_src>

<mosaic_0001>
module attributes {stable_mosaic.version = 11 : i64} {
  func.func @kernel(%arg0: i32, %arg1: memref<1x3x128xf32, #tpu.memory_space<vmem>>, %arg2: memref<1x64x128xf32, #tpu.memory_space<vmem>>, %arg3: memref<64x4xf32, #tpu.memory_space<vmem>>, %arg4: memref<64x128xf32, #tpu.memory_space<vmem>>, %arg5: memref<8x65xf32, #tpu.memory_space<vmem>>, %arg6: memref<1x8x128xf32, #tpu.memory_space<vmem>>) attributes {dimension_semantics = [#tpu.dimension_semantics<parallel>], iteration_bounds = array<i64: 2>, scalar_prefetch = 0 : i64, scratch_operands = 0 : i64, tpu.core_type = #tpu.core_type<tc>, window_params = [{transform_indices = @transform_0, window_bounds = array<i64: 1, 3, 128>}, {transform_indices = @transform_1, window_bounds = array<i64: 1, 64, 128>}, {pipeline_mode = #tpu.pipeline_mode<synchronous>, transform_indices = @transform_2, window_bounds = array<i64: 64, 4>}, {pipeline_mode = #tpu.pipeline_mode<synchronous>, transform_indices = @transform_3, window_bounds = array<i64: 64, 128>}, {pipeline_mode = #tpu.pipeline_mode<synchronous>, transform_indices = @transform_4, window_bounds = array<i64: 8, 65>}, {transform_indices = @transform_5, window_bounds = array<i64: 1, 8, 128>}]} {
    %c0 = arith.constant 0 : index
    %c0_0 = arith.constant 0 : index
    %c0_1 = arith.constant 0 : index
    %0 = vector.load %arg1[%c0, %c0_0, %c0_1] : memref<1x3x128xf32, #tpu.memory_space<vmem>>, vector<1x3x128xf32>
    %1 = vector.shape_cast %0 : vector<1x3x128xf32> to vector<3x128xf32>
    %c0_2 = arith.constant 0 : index
    %c0_3 = arith.constant 0 : index
    %c0_4 = arith.constant 0 : index
    %2 = vector.load %arg2[%c0_2, %c0_3, %c0_4] : memref<1x64x128xf32, #tpu.memory_space<vmem>>, vector<1x64x128xf32>
    %3 = vector.shape_cast %2 : vector<1x64x128xf32> to vector<64x128xf32>
    %c0_5 = arith.constant 0 : index
    %c0_6 = arith.constant 0 : index
    %4 = vector.load %arg3[%c0_5, %c0_6] : memref<64x4xf32, #tpu.memory_space<vmem>>, vector<64x1xf32>
    %5 = vector.extract_strided_slice %1 {offsets = [0, 0], sizes = [1, 128], strides = [1, 1]} : vector<3x128xf32> to vector<1x128xf32>
    %6 = vector.broadcast %4 : vector<64x1xf32> to vector<64x128xf32>
    %7 = vector.broadcast %5 : vector<1x128xf32> to vector<64x128xf32>
    %8 = arith.mulf %6, %7 : vector<64x128xf32>
    %9 = arith.addf %3, %8 : vector<64x128xf32>
    %c0_7 = arith.constant 0 : index
    %c1 = arith.constant 1 : index
    %10 = vector.load %arg3[%c0_7, %c1] : memref<64x4xf32, #tpu.memory_space<vmem>>, vector<64x1xf32>
    %11 = vector.extract_strided_slice %1 {offsets = [1, 0], sizes = [1, 128], strides = [1, 1]} : vector<3x128xf32> to vector<1x128xf32>
    %12 = vector.broadcast %10 : vector<64x1xf32> to vector<64x128xf32>
    %13 = vector.broadcast %11 : vector<1x128xf32> to vector<64x128xf32>
    %14 = arith.mulf %12, %13 : vector<64x128xf32>
    %15 = arith.addf %9, %14 : vector<64x128xf32>
    %c0_8 = arith.constant 0 : index
    %c2 = arith.constant 2 : index
    %16 = vector.load %arg3[%c0_8, %c2] : memref<64x4xf32, #tpu.memory_space<vmem>>, vector<64x1xf32>
    %17 = vector.extract_strided_slice %1 {offsets = [2, 0], sizes = [1, 128], strides = [1, 1]} : vector<3x128xf32> to vector<1x128xf32>
    %18 = vector.broadcast %16 : vector<64x1xf32> to vector<64x128xf32>
    %19 = vector.broadcast %17 : vector<1x128xf32> to vector<64x128xf32>
    %20 = arith.mulf %18, %19 : vector<64x128xf32>
    %21 = arith.addf %15, %20 : vector<64x128xf32>
    %cst = arith.constant 1.000000e-01 : f32
    %22 = vector.broadcast %cst : f32 to vector<64x128xf32>
    %23 = arith.mulf %22, %21 : vector<64x128xf32>
    %24 = arith.maximumf %21, %23 : vector<64x128xf32>
    %c0_9 = arith.constant 0 : index
    %c3 = arith.constant 3 : index
    %25 = vector.load %arg3[%c0_9, %c3] : memref<64x4xf32, #tpu.memory_space<vmem>>, vector<64x1xf32>
    %cst_10 = arith.constant dense<0.000000e+00> : vector<64xf32>
    %26 = vector.multi_reduction <add>, %24, %cst_10 [1] : vector<64x128xf32> to vector<64xf32>
    %27 = vector.shape_cast %26 : vector<64xf32> to vector<64x1xf32>
    %cst_11 = arith.constant 1.280000e+02 : f32
    %28 = vector.broadcast %cst_11 : f32 to vector<64x1xf32>
    %29 = arith.divf %27, %28 : vector<64x1xf32>
    %c0_12 = arith.constant 0 : index
    %c64 = arith.constant 64 : index
    %30 = vector.load %arg4[%c0_12, %c64] : memref<64x128xf32, #tpu.memory_space<vmem>>, vector<64x64xf32>
    %cst_13 = arith.constant dense<0.000000e+00> : vector<64x1xf32>
    %31 = tpu.matmul %30, %29, %cst_13 {dimension_numbers = #tpu.dot_dimension_numbers<[1], [0], [0], [1], [0, 0, 1, 1], [], []>} : vector<64x64xf32>, vector<64x1xf32>, vector<64x1xf32> -> vector<64x1xf32>
    %c0_14 = arith.constant 0 : index
    %c0_15 = arith.constant 0 : index
    %32 = vector.load %arg4[%c0_14, %c0_15] : memref<64x128xf32, #tpu.memory_space<vmem>>, vector<64x64xf32>
    %cst_16 = arith.constant dense<0.000000e+00> : vector<64x128xf32>
    %33 = tpu.matmul %32, %24, %cst_16 {dimension_numbers = #tpu.dot_dimension_numbers<[1], [0], [0], [1], [0, 0, 1, 1], [], []>} : vector<64x64xf32>, vector<64x128xf32>, vector<64x128xf32> -> vector<64x128xf32>
    %34 = vector.broadcast %31 : vector<64x1xf32> to vector<64x128xf32>
    %35 = arith.addf %33, %34 : vector<64x128xf32>
    %36 = vector.broadcast %25 : vector<64x1xf32> to vector<64x128xf32>
    %37 = arith.addf %35, %36 : vector<64x128xf32>
    %cst_17 = arith.constant 1.000000e-01 : f32
    %38 = vector.broadcast %cst_17 : f32 to vector<64x128xf32>
    %39 = arith.mulf %38, %37 : vector<64x128xf32>
    %40 = arith.maximumf %37, %39 : vector<64x128xf32>
    %c0_18 = arith.constant 0 : index
    %c0_19 = arith.constant 0 : index
    %41 = vector.load %arg5[%c0_18, %c0_19] : memref<8x65xf32, #tpu.memory_space<vmem>>, vector<8x64xf32>
    %cst_20 = arith.constant dense<0.000000e+00> : vector<8x128xf32>
    %42 = tpu.matmul %41, %40, %cst_20 {dimension_numbers = #tpu.dot_dimension_numbers<[1], [0], [0], [1], [0, 0, 1, 1], [], []>} : vector<8x64xf32>, vector<64x128xf32>, vector<8x128xf32> -> vector<8x128xf32>
    %c0_21 = arith.constant 0 : index
    %c64_22 = arith.constant 64 : index
    %43 = vector.load %arg5[%c0_21, %c64_22] : memref<8x65xf32, #tpu.memory_space<vmem>>, vector<8x1xf32>
    %44 = vector.broadcast %43 : vector<8x1xf32> to vector<8x128xf32>
    %45 = arith.addf %42, %44 : vector<8x128xf32>
    %c0_23 = arith.constant 0 : index
    %c0_24 = arith.constant 0 : index
    %c0_25 = arith.constant 0 : index
    %46 = vector.load %arg6[%c0_23, %c0_24, %c0_25] : memref<1x8x128xf32, #tpu.memory_space<vmem>>, vector<1x8x128xf32>
    %47 = vector.shape_cast %46 : vector<1x8x128xf32> to vector<8x128xf32>
    %48 = vector.shape_cast %45 : vector<8x128xf32> to vector<1x8x128xf32>
    tpu.vector_store %arg6[%c0_23, %c0_24, %c0_25], %48 {strides = array<i32>} : memref<1x8x128xf32, #tpu.memory_space<vmem>>, vector<1x8x128xf32>,
    return
  }
  func.func @transform_0(%arg0: i32) -> (i32, i32, i32) {
    %c0_i32 = arith.constant 0 : i32
    %c0_i32_0 = arith.constant 0 : i32
    %c0_i32_1 = arith.constant 0 : i32
    return %arg0, %c0_i32, %c0_i32_0 : i32, i32, i32
  }
  func.func @transform_1(%arg0: i32) -> (i32, i32, i32) {
    %c0_i32 = arith.constant 0 : i32
    %c0_i32_0 = arith.constant 0 : i32
    %c0_i32_1 = arith.constant 0 : i32
    return %arg0, %c0_i32, %c0_i32_0 : i32, i32, i32
  }
  func.func @transform_2(%arg0: i32) -> (i32, i32) {
    %c0_i32 = arith.constant 0 : i32
    %c0_i32_0 = arith.constant 0 : i32
    %c0_i32_1 = arith.constant 0 : i32
    return %c0_i32, %c0_i32_0 : i32, i32
  }
  func.func @transform_3(%arg0: i32) -> (i32, i32) {
    %c0_i32 = arith.constant 0 : i32
    %c0_i32_0 = arith.constant 0 : i32
    %c0_i32_1 = arith.constant 0 : i32
    return %c0_i32, %c0_i32_0 : i32, i32
  }
  func.func @transform_4(%arg0: i32) -> (i32, i32) {
    %c0_i32 = arith.constant 0 : i32
    %c0_i32_0 = arith.constant 0 : i32
    %c0_i32_1 = arith.constant 0 : i32
    return %c0_i32, %c0_i32_0 : i32, i32
  }
  func.func @transform_5(%arg0: i32) -> (i32, i32, i32) {
    %c0_i32 = arith.constant 0 : i32
    %c0_i32_0 = arith.constant 0 : i32
    %c0_i32_1 = arith.constant 0 : i32
    return %arg0, %c0_i32, %c0_i32_0 : i32, i32, i32
  }
}

</mosaic_0001>

<llo_original>
// kernel: tpu_custom_call.1
$region0: #{tpu_custom_call.1}
  #allocation0 [shape = 'u32[]', space=smem, size = 0x4, offset = 0x4, fixed_abs, tag = 'smem constant byte address 0x4 - core index']
  #allocation1 [shape = 'u32[72,128]{1,0:T(1,128)}', space=vmem, size = 0x9000, scoped, tag = 'internal scratch']
  %s0 = inlined_call_operand.vmem [shape: f32[2,3,128], index: 0, kind: input, shape index: {}]
  %s1 = inlined_call_operand.hbm [shape: f32[2,64,128], index: 1, kind: input, shape index: {}]
  %s2 = inlined_call_operand.vmem [shape: f32[64,4], index: 2, kind: input, shape index: {}]
  %s3 = inlined_call_operand.vmem [shape: f32[64,128], index: 3, kind: input, shape index: {}]
  %s4 = inlined_call_operand.vmem [shape: f32[8,65], index: 4, kind: input, shape index: {}]
  %s5 = inlined_call_operand.hbm [shape: f32[2,8,128], index: 5, kind: output, shape index: {}]
  %s6 = sld [smem:[#allocation0]]
  $region57: #{tpu_custom_call.1} parent=0
    _
  %s8 = ssub.s32 1, %s6
  %s9 = scalar_select 0, %s8, %s6
  $region1: #{tpu_custom_call.1} parent=0
    #allocation2 [shape = 'u8[65536]{0}', space=vmem, size = 0x10000, scoped, tag = 'input window, operand 1']
    #allocation3 [shape = 's32[2]{0}', space=sflag, size = 0x8, scoped, tag = 'scoped memory for tpu_custom_call.1']
    #allocation4 [shape = 's32[2]{0}', space=sflag, size = 0x8, scoped, tag = 'scoped memory for tpu_custom_call.1']
    #allocation5 [shape = 'u8[8192]{0}', space=vmem, size = 0x2000, scoped, tag = 'output window, operand 0']
    %10 = vsyncpa [#allocation3], 0
    %s11 = scalar_lea.sflag [#allocation3], 1
    %12 = vsyncpa %s11, 0
    %13 = vsyncpa [#allocation4], 0
    %s14 = scalar_lea.sflag [#allocation4], 1
    %15 = vsyncpa %s14, 0
    loop: start=0, step=1, limit=4
    $region2: #{tpu_custom_call.1} parent=1 // loop_pre_header
      _
    $region3: #{tpu_custom_call.1} parent=1 // loop_header
      %s17 = sphi 0, %s21
      %p18 = scmp.ge.s32.totalorder %s17, 4
      %s27 = sphi 0, %s29
      %s30 = sphi 0, %s27
      %s31 = sphi 0, %s30
      %s47 = sphi 0, %s31
      %s53 = sphi 0, %s55
      %s56 = sphi 0, %s53
      %s57 = sphi 0, %s56
      %s73 = sphi 0, %s57
      %s77 = sphi 0, %s77
      %s79 = sphi 0, %s77
      %s80 = sphi 0, %s79
      %s94 = sphi 0, %s80
      %s98 = sphi 0, %s98
      %s100 = sphi 0, %s98
      %s101 = sphi 0, %s100
      %s115 = sphi 0, %s101
      %s119 = sphi 0, %s119
      %s121 = sphi 0, %s119
      %s122 = sphi 0, %s121
      %s136 = sphi 0, %s122
      %s142 = sphi 0, %s144
      %s145 = sphi 0, %s142
      %s146 = sphi 0, %s145
      %s162 = sphi 0, %s146
    $region4: #{tpu_custom_call.1} parent=1 // loop_header_branch
      %20 = sbr.rel (%p18) target = $region8
    $region5: #{tpu_custom_call.1} parent=1 // loop_body
      %s22 = ssub.s32 %s17, 1
      %s23 = ssub.s32 %s17, 2
      %s24 = sadd.s32 %s17, 1
      %s25 = ssub.s32 %s17, %s24
      %p26 = scmp.eq.s32.totalorder %s25, 0
      %s28 = sadd.s32 %s27, 1
      %s29 = scalar_select %p26, %s27, %s28
      %p32 = pneg %p26
      %p33 = scmp.eq.s32.totalorder %s17, 1
      %p34 = por %p32, %p33
      %p35 = scmp.ne.s32.totalorder %s27, %s30
      %p36 = scmp.eq.s32.totalorder %s17, 0
      %p37 = por %p35, %p36
      %p38 = scmp.ne.s32.totalorder %s27, %s30
      %p39 = scmp.eq.s32.totalorder %s22, 1
      %p40 = por %p38, %p39
      %p41 = scmp.ne.s32.totalorder %s30, %s31
      %p42 = scmp.eq.s32.totalorder %s22, 0
      %p43 = por %p41, %p42
      %p44 = scmp.ne.s32.totalorder %s30, %s31
      %p45 = scmp.eq.s32.totalorder %s23, 1
      %p46 = por %p44, %p45
      %p48 = scmp.ne.s32.totalorder %s31, %s47
      %p49 = scmp.eq.s32.totalorder %s23, 0
      %p50 = por %p48, %p49
      %s51 = ssub.s32 %s17, %s24
      %p52 = scmp.eq.s32.totalorder %s51, 0
      %s54 = sadd.s32 %s53, 1
      %s55 = scalar_select %p52, %s53, %s54
      %p58 = pneg %p52
      %p59 = scmp.eq.s32.totalorder %s17, 1
      %p60 = por %p58, %p59
      %p61 = scmp.ne.s32.totalorder %s53, %s56
      %p62 = scmp.eq.s32.totalorder %s17, 0
      %p63 = por %p61, %p62
      %p64 = scmp.ne.s32.totalorder %s53, %s56
      %p65 = scmp.eq.s32.totalorder %s22, 1
      %p66 = por %p64, %p65
      %p67 = scmp.ne.s32.totalorder %s56, %s57
      %p68 = scmp.eq.s32.totalorder %s22, 0
      %p69 = por %p67, %p68
      %p70 = scmp.ne.s32.totalorder %s56, %s57
      %p71 = scmp.eq.s32.totalorder %s23, 1
      %p72 = por %p70, %p71
      %p74 = scmp.ne.s32.totalorder %s57, %s73
      %p75 = scmp.eq.s32.totalorder %s23, 0
      %p76 = por %p74, %p75
      %s78 = sadd.s32 %s77, 1
      %p81 = scmp.eq.s32.totalorder %s17, 1
      %p82 = scmp.ne.s32.totalorder %s77, %s79
      %p83 = scmp.eq.s32.totalorder %s17, 0
      %p84 = por %p82, %p83
      %p85 = scmp.ne.s32.totalorder %s77, %s79
      %p86 = scmp.eq.s32.totalorder %s22, 1
      %p87 = por %p85, %p86
      %p88 = scmp.ne.s32.totalorder %s79, %s80
      %p89 = scmp.eq.s32.totalorder %s22, 0
      %p90 = por %p88, %p89
      %p91 = scmp.ne.s32.totalorder %s79, %s80
      %p92 = scmp.eq.s32.totalorder %s23, 1
      %p93 = por %p91, %p92
      %p95 = scmp.ne.s32.totalorder %s80, %s94
      %p96 = scmp.eq.s32.totalorder %s23, 0
      %p97 = por %p95, %p96
      %s99 = sadd.s32 %s98, 1
      %p102 = scmp.eq.s32.totalorder %s17, 1
      %p103 = scmp.ne.s32.totalorder %s98, %s100
      %p104 = scmp.eq.s32.totalorder %s17, 0
      %p105 = por %p103, %p104
      %p106 = scmp.ne.s32.totalorder %s98, %s100
      %p107 = scmp.eq.s32.totalorder %s22, 1
      %p108 = por %p106, %p107
      %p109 = scmp.ne.s32.totalorder %s100, %s101
      %p110 = scmp.eq.s32.totalorder %s22, 0
      %p111 = por %p109, %p110
      %p112 = scmp.ne.s32.totalorder %s100, %s101
      %p113 = scmp.eq.s32.totalorder %s23, 1
      %p114 = por %p112, %p113
      %p116 = scmp.ne.s32.totalorder %s101, %s115
      %p117 = scmp.eq.s32.totalorder %s23, 0
      %p118 = por %p116, %p117
      %s120 = sadd.s32 %s119, 1
      %p123 = scmp.eq.s32.totalorder %s17, 1
      %p124 = scmp.ne.s32.totalorder %s119, %s121
      %p125 = scmp.eq.s32.totalorder %s17, 0
      %p126 = por %p124, %p125
      %p127 = scmp.ne.s32.totalorder %s119, %s121
      %p128 = scmp.eq.s32.totalorder %s22, 1
      %p129 = por %p127, %p128
      %p130 = scmp.ne.s32.totalorder %s121, %s122
      %p131 = scmp.eq.s32.totalorder %s22, 0
      %p132 = por %p130, %p131
      %p133 = scmp.ne.s32.totalorder %s121, %s122
      %p134 = scmp.eq.s32.totalorder %s23, 1
      %p135 = por %p133, %p134
      %p137 = scmp.ne.s32.totalorder %s122, %s136
      %p138 = scmp.eq.s32.totalorder %s23, 0
      %p139 = por %p137, %p138
      %s140 = ssub.s32 %s17, %s24
      %p141 = scmp.eq.s32.totalorder %s140, 0
      %s143 = sadd.s32 %s142, 1
      %s144 = scalar_select %p141, %s142, %s143
      %p147 = pneg %p141
      %p148 = scmp.eq.s32.totalorder %s17, 1
      %p149 = por %p147, %p148
      %p150 = scmp.ne.s32.totalorder %s142, %s145
      %p151 = scmp.eq.s32.totalorder %s17, 0
      %p152 = por %p150, %p151
      %p153 = scmp.ne.s32.totalorder %s142, %s145
      %p154 = scmp.eq.s32.totalorder %s22, 1
      %p155 = por %p153, %p154
      %p156 = scmp.ne.s32.totalorder %s145, %s146
      %p157 = scmp.eq.s32.totalorder %s22, 0
      %p158 = por %p156, %p157
      %p159 = scmp.ne.s32.totalorder %s145, %s146
      %p160 = scmp.eq.s32.totalorder %s23, 1
      %p161 = por %p159, %p160
      %p163 = scmp.ne.s32.totalorder %s146, %s162
      %p164 = scmp.eq.s32.totalorder %s23, 0
      %p165 = por %p163, %p164
      %p166 = scmp.le.s32.totalorder 1, %s17
      %p167 = scmp.lt.s32.totalorder %s17, 3
      %p168 = pnand %p166, %p167
      %p169 = pneg %p168
      // Predicated region
      $region9: #{tpu_custom_call.1} parent=5 // pred_check
        _
      $region10: #{tpu_custom_call.1} parent=5 // pred_check_branch
        %171 = sbr.rel (%p168) target = $region12
      $region11: #{tpu_custom_call.1} parent=5 // pred_region
        %s172 = ssub.s32 %s17, 1
        // Predicated region
        $region13: #{tpu_custom_call.1} parent=11 // pred_check
          %p173 = pneg %p90
        $region14: #{tpu_custom_call.1} parent=11 // pred_check_branch
          %175 = sbr.rel (%p173) target = $region16
        $region15: #{tpu_custom_call.1} parent=11 // pred_region
          _
        $region16: #{tpu_custom_call.1} parent=11 // pred_fallthru
          _
        // Predicated region
        $region17: #{tpu_custom_call.1} parent=11 // pred_check
          %p176 = pneg %p111
        $region18: #{tpu_custom_call.1} parent=11 // pred_check_branch
          %178 = sbr.rel (%p176) target = $region20
        $region19: #{tpu_custom_call.1} parent=11 // pred_region
          _
        $region20: #{tpu_custom_call.1} parent=11 // pred_fallthru
          _
        // Predicated region
        $region21: #{tpu_custom_call.1} parent=11 // pred_check
          %p179 = pneg %p132
        $region22: #{tpu_custom_call.1} parent=11 // pred_check_branch
          %181 = sbr.rel (%p179) target = $region24
        $region23: #{tpu_custom_call.1} parent=11 // pred_region
          _
        $region24: #{tpu_custom_call.1} parent=11 // pred_fallthru
          _
      $region12: #{tpu_custom_call.1} parent=5 // pred_fallthru
        _
      %p182 = scmp.lt.s32.totalorder %s17, 2
      // Predicated region
      $region25: #{tpu_custom_call.1} parent=5 // pred_check
        %p183 = pneg %p182
      $region26: #{tpu_custom_call.1} parent=5 // pred_check_branch
        %185 = sbr.rel (%p183) target = $region28
      $region27: #{tpu_custom_call.1} parent=5 // pred_region
        // Predicated region
        $region29: #{tpu_custom_call.1} parent=27 // pred_check
          %p186 = pneg %p37
        $region30: #{tpu_custom_call.1} parent=27 // pred_check_branch
          %188 = sbr.rel (%p186) target = $region32
        $region31: #{tpu_custom_call.1} parent=27 // pred_region
          %p189 = scmp.lt.s32.totalorder %s17, 1
          %s190 = scalar_select %p189, %s17, 1
          %s191 = smul.addr %s190, 4
          %s192 = scalar_lea.vmem %s0, %s191
        $region32: #{tpu_custom_call.1} parent=27 // pred_fallthru
          _
        // Predicated region
        $region33: #{tpu_custom_call.1} parent=27 // pred_check
          %p193 = pneg %p63
        $region34: #{tpu_custom_call.1} parent=27 // pred_check_branch
          %195 = sbr.rel (%p193) target = $region36
        $region35: #{tpu_custom_call.1} parent=27 // pred_region
          %s196 = sand.u32 %s53, 1
          %s197 = scalar_lea.sflag [#allocation3], %s196
          %s198 = sand.u32 %s53, 1
          %s199 = smul.addr %s198, 64
          %s200 = scalar_lea.vmem [#allocation2], %s199
          %202 = vsyncadd %s197, 0
          %s203 = smul.addr %s17, 8
          %s204 = smul.addr %s203, 8
          %s205 = scalar_lea.hbm %s1, %s204
          %s206 = sshll.u32 %s205, 4
          %s207 = int_to_ptr.hbm [resolvable:$true] %s206
          %s208 = sshll.u32 %s200, 4
          %s209 = int_to_ptr.vmem [resolvable:$true] %s208
          %214 = dma.hbm_to_vmem [thread:$0]  %s207, 1024, %s209, %s197, 128, 128, 8
        $region36: #{tpu_custom_call.1} parent=27 // pred_fallthru
          _
      $region28: #{tpu_custom_call.1} parent=5 // pred_fallthru
        _
      %p215 = scmp.le.s32.totalorder 1, %s17
      %p216 = scmp.lt.s32.totalorder %s17, 3
      %p217 = pnand %p215, %p216
      %p218 = pneg %p217
      // Predicated region
      $region37: #{tpu_custom_call.1} parent=5 // pred_check
        _
      $region38: #{tpu_custom_call.1} parent=5 // pred_check_branch
        %220 = sbr.rel (%p217) target = $region40
      $region39: #{tpu_custom_call.1} parent=5 // pred_region
        %s221 = ssub.s32 %s17, 1
        %s222 = sand.u32 %s56, 1
        %s223 = scalar_lea.sflag [#allocation3], %s222
        %s224 = sand.u32 %s56, 1
        %s225 = smul.addr %s224, 64
        %s226 = scalar_lea.vmem [#allocation2], %s225
        // Predicated region
        $region41: #{tpu_custom_call.1} parent=39 // pred_check
          %p227 = pneg %p69
        $region42: #{tpu_custom_call.1} parent=39 // pred_check_branch
          %229 = sbr.rel (%p227) target = $region44
        $region43: #{tpu_custom_call.1} parent=39 // pred_region
          %231 = dma.done %s223, 1024
        $region44: #{tpu_custom_call.1} parent=39 // pred_fallthru
          _
        %p232 = scmp.lt.s32.totalorder %s22, 1
        %s233 = scalar_select %p232, %s22, 1
        %s234 = smul.addr %s233, 4
        %s235 = scalar_lea.vmem %s0, %s234
        %p236 = pneg %p43
        %p237 = pneg %p40
        %s238 = sand.u32 %s56, 1
        %s239 = scalar_lea.sflag [#allocation3], %s238
        %s240 = sand.u32 %s56, 1
        %s241 = smul.addr %s240, 64
        %s242 = scalar_lea.vmem [#allocation2], %s241
        %p243 = pneg %p69
        %p244 = pneg %p66
        %p245 = pneg %p90
        %p246 = pneg %p87
        %p247 = pneg %p111
        %p248 = pneg %p108
        %p249 = pneg %p132
        %p250 = pneg %p129
        %p251 = pneg %p158
        %p252 = pneg %p155
        %s253 = sand.u32 %s145, 1
        %s254 = scalar_lea.sflag [#allocation4], %s253
        %s255 = sand.u32 %s145, 1
        %s256 = smul.addr %s255, 8
        %s257 = scalar_lea.vmem [#allocation5], %s256
        %p258 = scmp.lt.s32.totalorder %s22, 1
        %s259 = scalar_select %p258, %s22, 1
        %s260 = smul.addr %s259, 4
        %s261 = scalar_lea.vmem %s0, %s260
        %v262 = vld [vmem:[%s261] sm:$0x7]
        %v263 = vld [vmem:[%s226] sm:$0xff]
        %v264 = vld [vmem:[%s226 + $0x8] sm:$0xff]
        %v265 = vld [vmem:[%s226 + $0x10] sm:$0xff]
        %v266 = vld [vmem:[%s226 + $0x18] sm:$0xff]
        %v267 = vld [vmem:[%s226 + $0x20] sm:$0xff]
        %v268 = vld [vmem:[%s226 + $0x28] sm:$0xff]
        %v269 = vld [vmem:[%s226 + $0x30] sm:$0xff]
        %v270 = vld [vmem:[%s226 + $0x38] sm:$0xff]
        %v271 = vld [vmem:[%s2] sm:$0xff]
        %v272 = vld [vmem:[%s2 + $0x8] sm:$0xff]
        %v273 = vld [vmem:[%s2 + $0x10] sm:$0xff]
        %v274 = vld [vmem:[%s2 + $0x18] sm:$0xff]
        %v275 = vld [vmem:[%s2 + $0x20] sm:$0xff]
        %v276 = vld [vmem:[%s2 + $0x28] sm:$0xff]
        %v277 = vld [vmem:[%s2 + $0x30] sm:$0xff]
        %v278 = vld [vmem:[%s2 + $0x38] sm:$0xff]
        %280 = vset.pattern.permute.xlu0 0
        %281 = vperm.xlu0 %280, %v271
        %v282 = vpop.permute.xlu0 %281
        %285 = vset.pattern.permute.xlu0 0
        %286 = vperm.xlu0 %285, %v272
        %v287 = vpop.permute.xlu0 %286
        %290 = vset.pattern.permute.xlu0 0
        %291 = vperm.xlu0 %290, %v273
        %v292 = vpop.permute.xlu0 %291
        %295 = vset.pattern.permute.xlu0 0
        %296 = vperm.xlu0 %295, %v274
        %v297 = vpop.permute.xlu0 %296
        %300 = vset.pattern.permute.xlu0 0
        %301 = vperm.xlu0 %300, %v275
        %v302 = vpop.permute.xlu0 %301
        %305 = vset.pattern.permute.xlu0 0
        %306 = vperm.xlu0 %305, %v276
        %v307 = vpop.permute.xlu0 %306
        %310 = vset.pattern.permute.xlu0 0
        %311 = vperm.xlu0 %310, %v277
        %v312 = vpop.permute.xlu0 %311
        %315 = vset.pattern.permute.xlu0 0
        %316 = vperm.xlu0 %315, %v278
        %v317 = vpop.permute.xlu0 %316
        %v319 = vperm.slane %v262, 0
        %v320 = vmul.f32 %v282, %v319
        %v321 = vmul.f32 %v287, %v319
        %v322 = vmul.f32 %v292, %v319
        %v323 = vmul.f32 %v297, %v319
        %v324 = vmul.f32 %v302, %v319
        %v325 = vmul.f32 %v307, %v319
        %v326 = vmul.f32 %v312, %v319
        %v327 = vmul.f32 %v317, %v319
        %v328 = vadd.f32 %v263, %v320
        %v329 = vadd.f32 %v264, %v321
        %v330 = vadd.f32 %v265, %v322
        %v331 = vadd.f32 %v266, %v323
        %v332 = vadd.f32 %v267, %v324
        %v333 = vadd.f32 %v268, %v325
        %v334 = vadd.f32 %v269, %v326
        %v335 = vadd.f32 %v270, %v327
        %336 = vset.pattern.permute.xlu0 1
        %337 = vperm.xlu0 %336, %v271
        %v338 = vpop.permute.xlu0 %337
        %340 = vset.pattern.permute.xlu0 1
        %341 = vperm.xlu0 %340, %v272
        %v342 = vpop.permute.xlu0 %341
        %344 = vset.pattern.permute.xlu0 1
        %345 = vperm.xlu0 %344, %v273
        %v346 = vpop.permute.xlu0 %345
        %348 = vset.pattern.permute.xlu0 1
        %349 = vperm.xlu0 %348, %v274
        %v350 = vpop.permute.xlu0 %349
        %352 = vset.pattern.permute.xlu0 1
        %353 = vperm.xlu0 %352, %v275
        %v354 = vpop.permute.xlu0 %353
        %356 = vset.pattern.permute.xlu0 1
        %357 = vperm.xlu0 %356, %v276
        %v358 = vpop.permute.xlu0 %357
        %360 = vset.pattern.permute.xlu0 1
        %361 = vperm.xlu0 %360, %v277
        %v362 = vpop.permute.xlu0 %361
        %364 = vset.pattern.permute.xlu0 1
        %365 = vperm.xlu0 %364, %v278
        %v366 = vpop.permute.xlu0 %365
        %v368 = vperm.slane %v262, 1
        %v369 = vmul.f32 %v338, %v368
        %v370 = vmul.f32 %v342, %v368
        %v371 = vmul.f32 %v346, %v368
        %v372 = vmul.f32 %v350, %v368
        %v373 = vmul.f32 %v354, %v368
        %v374 = vmul.f32 %v358, %v368
        %v375 = vmul.f32 %v362, %v368
        %v376 = vmul.f32 %v366, %v368
        %v377 = vadd.f32 %v328, %v369
        %v378 = vadd.f32 %v329, %v370
        %v379 = vadd.f32 %v330, %v371
        %v380 = vadd.f32 %v331, %v372
        %v381 = vadd.f32 %v332, %v373
        %v382 = vadd.f32 %v333, %v374
        %v383 = vadd.f32 %v334, %v375
        %v384 = vadd.f32 %v335, %v376
        %385 = vset.pattern.permute.xlu0 2
        %386 = vperm.xlu0 %385, %v271
        %v387 = vpop.permute.xlu0 %386
        %389 = vset.pattern.permute.xlu0 2
        %390 = vperm.xlu0 %389, %v272
        %v391 = vpop.permute.xlu0 %390
        %393 = vset.pattern.permute.xlu0 2
        %394 = vperm.xlu0 %393, %v273
        %v395 = vpop.permute.xlu0 %394
        %397 = vset.pattern.permute.xlu0 2
        %398 = vperm.xlu0 %397, %v274
        %v399 = vpop.permute.xlu0 %398
        %401 = vset.pattern.permute.xlu0 2
        %402 = vperm.xlu0 %401, %v275
        %v403 = vpop.permute.xlu0 %402
        %405 = vset.pattern.permute.xlu0 2
        %406 = vperm.xlu0 %405, %v276
        %v407 = vpop.permute.xlu0 %406
        %409 = vset.pattern.permute.xlu0 2
        %410 = vperm.xlu0 %409, %v277
        %v411 = vpop.permute.xlu0 %410
        %413 = vset.pattern.permute.xlu0 2
        %414 = vperm.xlu0 %413, %v278
        %v415 = vpop.permute.xlu0 %414
        %v417 = vperm.slane %v262, 2
        %v418 = vmul.f32 %v387, %v417
        %v419 = vmul.f32 %v391, %v417
        %v420 = vmul.f32 %v395, %v417
        %v421 = vmul.f32 %v399, %v417
        %v422 = vmul.f32 %v403, %v417
        %v423 = vmul.f32 %v407, %v417
        %v424 = vmul.f32 %v411, %v417
        %v425 = vmul.f32 %v415, %v417
        %v426 = vadd.f32 %v377, %v418
        %v427 = vadd.f32 %v378, %v419
        %v428 = vadd.f32 %v379, %v420
        %v429 = vadd.f32 %v380, %v421
        %v430 = vadd.f32 %v381, %v422
        %v431 = vadd.f32 %v382, %v423
        %v432 = vadd.f32 %v383, %v424
        %v433 = vadd.f32 %v384, %v425
        %v434 = vmul.f32 %v426, 0.1
        %v435 = vmul.f32 %v427, 0.1
        %v436 = vmul.f32 %v428, 0.1
        %v437 = vmul.f32 %v429, 0.1
        %v438 = vmul.f32 %v430, 0.1
        %v439 = vmul.f32 %v431, 0.1
        %v440 = vmul.f32 %v432, 0.1
        %v441 = vmul.f32 %v433, 0.1
        %v442 = vmax.f32 %v426, %v434
        %v443 = vmax.f32 %v427, %v435
        %v444 = vmax.f32 %v428, %v436
        %v445 = vmax.f32 %v429, %v437
        %v446 = vmax.f32 %v430, %v438
        %v447 = vmax.f32 %v431, %v439
        %v448 = vmax.f32 %v432, %v440
        %v449 = vmax.f32 %v433, %v441
        %450 = vadd.xlane.f32.xlu0 %v442
        %v451 = vpop.xlane.xlu0 %450
        %452 = vadd.xlane.f32.xlu0 %v443
        %v453 = vpop.xlane.xlu0 %452
        %454 = vadd.xlane.f32.xlu0 %v444
        %v455 = vpop.xlane.xlu0 %454
        %456 = vadd.xlane.f32.xlu0 %v445
        %v457 = vpop.xlane.xlu0 %456
        %458 = vadd.xlane.f32.xlu0 %v446
        %v459 = vpop.xlane.xlu0 %458
        %460 = vadd.xlane.f32.xlu0 %v447
        %v461 = vpop.xlane.xlu0 %460
        %462 = vadd.xlane.f32.xlu0 %v448
        %v463 = vpop.xlane.xlu0 %462
        %464 = vadd.xlane.f32.xlu0 %v449
        %v465 = vpop.xlane.xlu0 %464
        %v466 = vrcp.pop 128.0
        %v467 = vmul.f32 128.0, %v466
        %v468 = vsub.f32 1.0, %v467
        %v469 = vmul.f32 %v466, %v468
        %v470 = vadd.f32 %v466, %v469
        %vm471 = vweird.f32 %v466
        %v472 = vsel %vm471, %v466, %v470
        %v473 = vmul.f32 %v451, %v472
        %v474 = vmul.f32 %v453, %v472
        %v475 = vmul.f32 %v455, %v472
        %v476 = vmul.f32 %v457, %v472
        %v477 = vmul.f32 %v459, %v472
        %v478 = vmul.f32 %v461, %v472
        %v479 = vmul.f32 %v463, %v472
        %v480 = vmul.f32 %v465, %v472
        %v481 = vld [vmem:[%s3] sm:$0xff]
        %v482 = vld [vmem:[%s3 + $0x8] sm:$0xff]
        %v483 = vld [vmem:[%s3 + $0x10] sm:$0xff]
        %v484 = vld [vmem:[%s3 + $0x18] sm:$0xff]
        %v485 = vld [vmem:[%s3 + $0x20] sm:$0xff]
        %v486 = vld [vmem:[%s3 + $0x28] sm:$0xff]
        %v487 = vld [vmem:[%s3 + $0x30] sm:$0xff]
        %v488 = vld [vmem:[%s3 + $0x38] sm:$0xff]
        %497 = vrot.lane.b32.xlu0 %v481, 64
        %v498 = vpop.permute.xlu0 %497
        %499 = vrot.lane.b32.xlu0 %v482, 64
        %v500 = vpop.permute.xlu0 %499
        %501 = vrot.lane.b32.xlu0 %v483, 64
        %v502 = vpop.permute.xlu0 %501
        %503 = vrot.lane.b32.xlu0 %v484, 64
        %v504 = vpop.permute.xlu0 %503
        %505 = vrot.lane.b32.xlu0 %v485, 64
        %v506 = vpop.permute.xlu0 %505
        %507 = vrot.lane.b32.xlu0 %v486, 64
        %v508 = vpop.permute.xlu0 %507
        %509 = vrot.lane.b32.xlu0 %v487, 64
        %v510 = vpop.permute.xlu0 %509
        %511 = vrot.lane.b32.xlu0 %v488, 64
        %v512 = vpop.permute.xlu0 %511
        %vm513 = vcmask 523264
        %v514 = vsel %vm513, %v498, 0
        %v516 = vsel %vm513, %v500, 0
        %v518 = vsel %vm513, %v502, 0
        %v520 = vsel %vm513, %v504, 0
        %v522 = vsel %vm513, %v506, 0
        %v524 = vsel %vm513, %v508, 0
        %v526 = vsel %vm513, %v510, 0
        %v528 = vsel %vm513, %v512, 0
        %530 = vmatpush.msra.mxu0 0.0
        %531 = vmatpush.msra.mxu0 0.0
        %532 = vmatpush.msra.mxu0 0.0
        %533 = vmatpush.msra.mxu0 0.0
        %534 = vmatpush.msra.mxu0 0.0
        %535 = vmatpush.msra.mxu0 0.0
        %536 = vmatpush.msra.mxu0 0.0
        %537 = vmatpush.msra.mxu0 0.0
        %538 = vmatpush.msra.mxu0 %v480
        %539 = vmatpush.msra.mxu0 %v479
        %540 = vmatpush.msra.mxu0 %v478
        %541 = vmatpush.msra.mxu0 %v477
        %542 = vmatpush.msra.mxu0 %v476
        %543 = vmatpush.msra.mxu0 %v475
        %544 = vmatpush.msra.mxu0 %v474
        %545 = vmatpush.msra.mxu0 %v473
        %546 = vmatmul.f32.gmra.mxu0 %v514
        %v547 = vpop.f32.mrf.mxu0
        %v548 = vadd.f32 0.0, %v547
        %549 = vmatmul.f32.gmra.mxu0 %v516
        %v550 = vpop.f32.mrf.mxu0
        %v551 = vadd.f32 0.0, %v550
        %552 = vmatmul.f32.gmra.mxu0 %v518
        %v553 = vpop.f32.mrf.mxu0
        %v554 = vadd.f32 0.0, %v553
        %555 = vmatmul.f32.gmra.mxu0 %v520
        %v556 = vpop.f32.mrf.mxu0
        %v557 = vadd.f32 0.0, %v556
        %558 = vmatmul.f32.gmra.mxu0 %v522
        %v559 = vpop.f32.mrf.mxu0
        %v560 = vadd.f32 0.0, %v559
        %561 = vmatmul.f32.gmra.mxu0 %v524
        %v562 = vpop.f32.mrf.mxu0
        %v563 = vadd.f32 0.0, %v562
        %564 = vmatmul.f32.gmra.mxu0 %v526
        %v565 = vpop.f32.mrf.mxu0
        %v566 = vadd.f32 0.0, %v565
        %567 = vmatmul.f32.gmra.mxu0 %v528
        %v568 = vpop.f32.mrf.mxu0
        %v569 = vadd.f32 0.0, %v568
        %570 = vdwg.mxu0
        %572 = vset.pattern.permute.xlu0 0
        %573 = vperm.xlu0 %572, %v548
        %v574 = vpop.permute.xlu0 %573
        %577 = vset.pattern.permute.xlu0 0
        %578 = vperm.xlu0 %577, %v551
        %v579 = vpop.permute.xlu0 %578
        %582 = vset.pattern.permute.xlu0 0
        %583 = vperm.xlu0 %582, %v554
        %v584 = vpop.permute.xlu0 %583
        %587 = vset.pattern.permute.xlu0 0
        %588 = vperm.xlu0 %587, %v557
        %v589 = vpop.permute.xlu0 %588
        %592 = vset.pattern.permute.xlu0 0
        %593 = vperm.xlu0 %592, %v560
        %v594 = vpop.permute.xlu0 %593
        %597 = vset.pattern.permute.xlu0 0
        %598 = vperm.xlu0 %597, %v563
        %v599 = vpop.permute.xlu0 %598
        %602 = vset.pattern.permute.xlu0 0
        %603 = vperm.xlu0 %602, %v566
        %v604 = vpop.permute.xlu0 %603
        %607 = vset.pattern.permute.xlu0 0
        %608 = vperm.xlu0 %607, %v569
        %v609 = vpop.permute.xlu0 %608
        %v611 = vsel %vm513, %v481, 0
        %v613 = vsel %vm513, %v482, 0
        %v615 = vsel %vm513, %v483, 0
        %v617 = vsel %vm513, %v484, 0
        %v619 = vsel %vm513, %v485, 0
        %v621 = vsel %vm513, %v486, 0
        %v623 = vsel %vm513, %v487, 0
        %v625 = vsel %vm513, %v488, 0
        %627 = vmatpush.msra.mxu0 0.0
        %628 = vmatpush.msra.mxu0 0.0
        %629 = vmatpush.msra.mxu0 0.0
        %630 = vmatpush.msra.mxu0 0.0
        %631 = vmatpush.msra.mxu0 0.0
        %632 = vmatpush.msra.mxu0 0.0
        %633 = vmatpush.msra.mxu0 0.0
        %634 = vmatpush.msra.mxu0 0.0
        %635 = vmatpush.msra.mxu0 %v449
        %636 = vmatpush.msra.mxu0 %v448
        %637 = vmatpush.msra.mxu0 %v447
        %638 = vmatpush.msra.mxu0 %v446
        %639 = vmatpush.msra.mxu0 %v445
        %640 = vmatpush.msra.mxu0 %v444
        %641 = vmatpush.msra.mxu0 %v443
        %642 = vmatpush.msra.mxu0 %v442
        %643 = vmatmul.f32.gmra.mxu0 %v611
        %v644 = vpop.f32.mrf.mxu0
        %v645 = vadd.f32 %v574, %v644
        %646 = vmatmul.f32.gmra.mxu0 %v613
        %v647 = vpop.f32.mrf.mxu0
        %v648 = vadd.f32 %v579, %v647
        %649 = vmatmul.f32.gmra.mxu0 %v615
        %v650 = vpop.f32.mrf.mxu0
        %v651 = vadd.f32 %v584, %v650
        %652 = vmatmul.f32.gmra.mxu0 %v617
        %v653 = vpop.f32.mrf.mxu0
        %v654 = vadd.f32 %v589, %v653
        %655 = vmatmul.f32.gmra.mxu0 %v619
        %v656 = vpop.f32.mrf.mxu0
        %v657 = vadd.f32 %v594, %v656
        %658 = vmatmul.f32.gmra.mxu0 %v621
        %v659 = vpop.f32.mrf.mxu0
        %v660 = vadd.f32 %v599, %v659
        %661 = vmatmul.f32.gmra.mxu0 %v623
        %v662 = vpop.f32.mrf.mxu0
        %v663 = vadd.f32 %v604, %v662
        %664 = vmatmul.f32.gmra.mxu0 %v625
        %v665 = vpop.f32.mrf.mxu0
        %v666 = vadd.f32 %v609, %v665
        %667 = vdwg.mxu0
        %668 = vset.pattern.permute.xlu0 3
        %669 = vperm.xlu0 %668, %v271
        %v670 = vpop.permute.xlu0 %669
        %672 = vset.pattern.permute.xlu0 3
        %673 = vperm.xlu0 %672, %v272
        %v674 = vpop.permute.xlu0 %673
        %676 = vset.pattern.permute.xlu0 3
        %677 = vperm.xlu0 %676, %v273
        %v678 = vpop.permute.xlu0 %677
        %680 = vset.pattern.permute.xlu0 3
        %681 = vperm.xlu0 %680, %v274
        %v682 = vpop.permute.xlu0 %681
        %684 = vset.pattern.permute.xlu0 3
        %685 = vperm.xlu0 %684, %v275
        %v686 = vpop.permute.xlu0 %685
        %688 = vset.pattern.permute.xlu0 3
        %689 = vperm.xlu0 %688, %v276
        %v690 = vpop.permute.xlu0 %689
        %692 = vset.pattern.permute.xlu0 3
        %693 = vperm.xlu0 %692, %v277
        %v694 = vpop.permute.xlu0 %693
        %696 = vset.pattern.permute.xlu0 3
        %697 = vperm.xlu0 %696, %v278
        %v698 = vpop.permute.xlu0 %697
        %v700 = vadd.f32 %v645, %v670
        %v701 = vadd.f32 %v648, %v674
        %v702 = vadd.f32 %v651, %v678
        %v703 = vadd.f32 %v654, %v682
        %v704 = vadd.f32 %v657, %v686
        %v705 = vadd.f32 %v660, %v690
        %v706 = vadd.f32 %v663, %v694
        %v707 = vadd.f32 %v666, %v698
        %v708 = vmul.f32 %v700, 0.1
        %v709 = vmul.f32 %v701, 0.1
        %v710 = vmul.f32 %v702, 0.1
        %v711 = vmul.f32 %v703, 0.1
        %v712 = vmul.f32 %v704, 0.1
        %v713 = vmul.f32 %v705, 0.1
        %v714 = vmul.f32 %v706, 0.1
        %v715 = vmul.f32 %v707, 0.1
        %v716 = vmax.f32 %v700, %v708
        %v717 = vmax.f32 %v701, %v709
        %v718 = vmax.f32 %v702, %v710
        %v719 = vmax.f32 %v703, %v711
        %v720 = vmax.f32 %v704, %v712
        %v721 = vmax.f32 %v705, %v713
        %v722 = vmax.f32 %v706, %v714
        %v723 = vmax.f32 %v707, %v715
        %v724 = vld [vmem:[%s4] sm:$0xff]
        %726 = vset.pattern.permute.xlu0 64
        %727 = vperm.xlu0 %726, %v724
        %v728 = vpop.permute.xlu0 %727
        %v730 = vsel %vm513, %v724, 0
        %732 = vmatpush.msra.mxu0 0.0
        %733 = vmatpush.msra.mxu0 0.0
        %734 = vmatpush.msra.mxu0 0.0
        %735 = vmatpush.msra.mxu0 0.0
        %736 = vmatpush.msra.mxu0 0.0
        %737 = vmatpush.msra.mxu0 0.0
        %738 = vmatpush.msra.mxu0 0.0
        %739 = vmatpush.msra.mxu0 0.0
        %740 = vmatpush.msra.mxu0 %v723
        %741 = vmatpush.msra.mxu0 %v722
        %742 = vmatpush.msra.mxu0 %v721
        %743 = vmatpush.msra.mxu0 %v720
        %744 = vmatpush.msra.mxu0 %v719
        %745 = vmatpush.msra.mxu0 %v718
        %746 = vmatpush.msra.mxu0 %v717
        %747 = vmatpush.msra.mxu0 %v716
        %748 = vmatmul.f32.gmra.mxu0 %v730
        %v749 = vpop.f32.mrf.mxu0
        %v750 = vadd.f32 %v728, %v749
        %751 = vdwg.mxu0
        %752 = vst [vmem:[%s257] sm:$0xff] %v750
        %s753 = sand.u32 %s145, 1
        %s754 = scalar_lea.sflag [#allocation4], %s753
        %s755 = sand.u32 %s145, 1
        %s756 = smul.addr %s755, 8
        %s757 = scalar_lea.vmem [#allocation5], %s756
        // Predicated region
        $region45: #{tpu_custom_call.1} parent=39 // pred_check
          %p758 = pneg %p155
        $region46: #{tpu_custom_call.1} parent=39 // pred_check_branch
          %760 = sbr.rel (%p758) target = $region48
        $region47: #{tpu_custom_call.1} parent=39 // pred_region
          %762 = vsyncadd %s754, 0
          %s763 = smul.addr %s22, 8
          %s764 = scalar_lea.hbm %s5, %s763
          %s766 = sshll.u32 %s757, 4
          %s767 = int_to_ptr.vmem [resolvable:$true] %s766
          %s768 = sshll.u32 %s764, 4
          %s769 = int_to_ptr.hbm [resolvable:$true] %s768
          %771 = dma.vmem_to_hbm [thread:$0]  %s767, 128, %s769, %s754
        $region48: #{tpu_custom_call.1} parent=39 // pred_fallthru
          _
      $region40: #{tpu_custom_call.1} parent=5 // pred_fallthru
        _
      %p772 = scmp.le.s32.totalorder 2, %s17
      // Predicated region
      $region49: #{tpu_custom_call.1} parent=5 // pred_check
        %p773 = pneg %p772
      $region50: #{tpu_custom_call.1} parent=5 // pred_check_branch
        %775 = sbr.rel (%p773) target = $region52
      $region51: #{tpu_custom_call.1} parent=5 // pred_region
        %s776 = ssub.s32 %s17, 2
        // Predicated region
        $region53: #{tpu_custom_call.1} parent=51 // pred_check
          %p777 = pneg %p161
        $region54: #{tpu_custom_call.1} parent=51 // pred_check_branch
          %779 = sbr.rel (%p777) target = $region56
        $region55: #{tpu_custom_call.1} parent=51 // pred_region
          %s780 = sand.u32 %s146, 1
          %s781 = scalar_lea.sflag [#allocation4], %s780
          %s782 = sand.u32 %s146, 1
          %s783 = smul.addr %s782, 8
          %s784 = scalar_lea.vmem [#allocation5], %s783
          %786 = dma.done %s781, 128
        $region56: #{tpu_custom_call.1} parent=51 // pred_fallthru
          _
      $region52: #{tpu_custom_call.1} parent=5 // pred_fallthru
        _
    $region6: #{tpu_custom_call.1} parent=1 // loop_footer
      %s21 = sadd.s32 1, %s17
    $region7: #{tpu_custom_call.1} parent=1 // loop_footer_branch
      %16 = sbr.rel target = $region3
    $region8: #{tpu_custom_call.1} parent=1 // loop_exit
      _
    %787 = vsyncpa [#allocation3], 1
    %s788 = scalar_lea.sflag [#allocation3], 1
    %789 = vsyncpa %s788, 1
    %790 = vsyncpa [#allocation4], 1
    %s791 = scalar_lea.sflag [#allocation4], 1
    %792 = vsyncpa %s791, 1

</llo_original>
